<compile_context>
chip_gen: v7x
topology: tpu7x:2x2x1
jax: 0.10.0
libtpu: 0.0.40
codegen_flags: <defaults>
</compile_context>

<pallas_src>
import jax
import jax.numpy as jnp
from jax.experimental import pallas as pl
from jax.experimental.pallas import tpu as pltpu

IN_FEATURES = 3
OUT_FEATURES = 8


def _linear_tanh_sq_kernel(x_ref, wb_ref, o_ref):
    # x_ref:  (1, 3)  f32 in SMEM  -- read element-wise as scalars
    # wb_ref: (4, 8)  f32 in VMEM  -- rows 0..2 = W^T, row 3 = bias
    # o_ref:  (1, 8)  f32 in VMEM
    wb = wb_ref[...]                       # load the tiny param slab into vregs once
    x0 = x_ref[0, 0]
    x1 = x_ref[0, 1]
    x2 = x_ref[0, 2]
    # Unrolled K=3 multiply-accumulate on the VPU; no MXU push/pop latency.
    y = x0 * wb[0:1, :] + x1 * wb[1:2, :] + x2 * wb[2:3, :] + wb[3:4, :]
    v1 = jnp.tanh(y)
    # v1 in (-1, 1)  =>  v1 * min(v1, 6) / 6 == v1 * v1 * (1/6)
    o_ref[...] = (v1 * v1) * jnp.float32(1.0 / 6.0)


def pack_params(weight, bias):
    """Pack PyTorch-layout Linear params (weight: (8,3), bias: (8,)) into a
    single (4, 8) slab: rows 0..2 are W^T, row 3 is the bias. Done once at init."""
    return jnp.concatenate(
        [weight.T.astype(jnp.float32), bias.reshape(1, -1).astype(jnp.float32)],
        axis=0,
    )  # (4, 8)


@jax.jit
def model_forward(x, packed_params):
    """x: (1, 3) f32; packed_params: (4, 8) f32 from pack_params()."""
    return pl.pallas_call(
        _linear_tanh_sq_kernel,
        out_shape=jax.ShapeDtypeStruct((1, OUT_FEATURES), jnp.float32),
        # Tiny arrays: full-array blocks, no grid.
        in_specs=[
            pl.BlockSpec(memory_space=pltpu.SMEM),   # x: 3 scalars via SMEM
            pl.BlockSpec(memory_space=pltpu.VMEM),   # packed W^T + bias (one DMA)
        ],
        out_specs=pl.BlockSpec(memory_space=pltpu.VMEM),
    )(x, packed_params)
    # TODO(synk): at B=1 this layer is pure launch overhead; for a real batched
    # use-case, re-lay out as (8, B) lane-dense output with a parallel grid over B.


if __name__ == "__main__":
    key = jax.random.PRNGKey(0)
    kx, kw, kb = jax.random.split(key, 3)

    # Deterministic "parameters" for Linear(3, 8): weight (8, 3), bias (8,)
    weight = jax.random.normal(kw, (OUT_FEATURES, IN_FEATURES), dtype=jnp.float32) * 0.5
    bias = jax.random.normal(kb, (OUT_FEATURES,), dtype=jnp.float32) * 0.1

    # Input matching the module's x1 = torch.randn(1, 3)
    x1 = jax.random.normal(kx, (1, IN_FEATURES), dtype=jnp.float32)

    # One-time parameter packing (kernel layout), kept out of the per-call path.
    packed = pack_params(weight, bias)

    out = model_forward(x1, packed)
    out = jax.block_until_ready(out)

    # Reference check in plain JAX (same semantics as the PyTorch forward).
    v1_ref = jnp.tanh(x1 @ weight.T + bias)
    ref = v1_ref * jnp.minimum(v1_ref, 6.0) / 6.0
    assert out.shape == (1, OUT_FEATURES)
    assert jnp.allclose(out, ref, atol=1e-5, rtol=1e-5)

    print("KERNEL_OK")
</pallas_src>

<mosaic_0001>
module attributes {stable_mosaic.version = 11 : i64} {
  func.func @_linear_tanh_sq_kernel(%arg0: memref<1x3xf32, #tpu.memory_space<smem>>, %arg1: memref<4x8xf32, #tpu.memory_space<vmem>>, %arg2: memref<1x8xf32, #tpu.memory_space<vmem>>) attributes {dimension_semantics = [], scalar_prefetch = 0 : i64, scratch_operands = 0 : i64, tpu.core_type = #tpu.core_type<tc>} {
    %c0 = arith.constant 0 : index
    %c0_0 = arith.constant 0 : index
    %0 = vector.load %arg1[%c0, %c0_0] : memref<4x8xf32, #tpu.memory_space<vmem>>, vector<4x8xf32>
    %c0_1 = arith.constant 0 : index
    %c0_2 = arith.constant 0 : index
    %1 = memref.load %arg0[%c0_1, %c0_2] : memref<1x3xf32, #tpu.memory_space<smem>>
    %c0_3 = arith.constant 0 : index
    %c1 = arith.constant 1 : index
    %2 = memref.load %arg0[%c0_3, %c1] : memref<1x3xf32, #tpu.memory_space<smem>>
    %c0_4 = arith.constant 0 : index
    %c2 = arith.constant 2 : index
    %3 = memref.load %arg0[%c0_4, %c2] : memref<1x3xf32, #tpu.memory_space<smem>>
    %4 = vector.extract_strided_slice %0 {offsets = [0, 0], sizes = [1, 8], strides = [1, 1]} : vector<4x8xf32> to vector<1x8xf32>
    %5 = vector.broadcast %1 : f32 to vector<1x8xf32>
    %6 = arith.mulf %5, %4 : vector<1x8xf32>
    %7 = vector.extract_strided_slice %0 {offsets = [1, 0], sizes = [1, 8], strides = [1, 1]} : vector<4x8xf32> to vector<1x8xf32>
    %8 = vector.broadcast %2 : f32 to vector<1x8xf32>
    %9 = arith.mulf %8, %7 : vector<1x8xf32>
    %10 = arith.addf %6, %9 : vector<1x8xf32>
    %11 = vector.extract_strided_slice %0 {offsets = [2, 0], sizes = [1, 8], strides = [1, 1]} : vector<4x8xf32> to vector<1x8xf32>
    %12 = vector.broadcast %3 : f32 to vector<1x8xf32>
    %13 = arith.mulf %12, %11 : vector<1x8xf32>
    %14 = arith.addf %10, %13 : vector<1x8xf32>
    %15 = vector.extract_strided_slice %0 {offsets = [3, 0], sizes = [1, 8], strides = [1, 1]} : vector<4x8xf32> to vector<1x8xf32>
    %16 = arith.addf %14, %15 : vector<1x8xf32>
    %17 = math.tanh %16 : vector<1x8xf32>
    %18 = arith.mulf %17, %17 : vector<1x8xf32>
    %cst = arith.constant 0.166666672 : f32
    %19 = vector.broadcast %cst : f32 to vector<1x8xf32>
    %20 = arith.mulf %18, %19 : vector<1x8xf32>
    %c0_5 = arith.constant 0 : index
    %c0_6 = arith.constant 0 : index
    %21 = vector.load %arg2[%c0_5, %c0_6] : memref<1x8xf32, #tpu.memory_space<vmem>>, vector<1x8xf32>
    tpu.vector_store %arg2[%c0_5, %c0_6], %20 {strides = array<i32>} : memref<1x8xf32, #tpu.memory_space<vmem>>, vector<1x8xf32>,
    return
  }
}

</mosaic_0001>

<llo_original>
// kernel: model_forward.1
$region0: #{model_forward.1}
  #allocation0 [shape = 'u32[]', space=smem, size = 0x4, offset = 0x4, fixed_abs, tag = 'smem constant byte address 0x4 - core index']
  #allocation1 [shape = 'u32[144,128]{1,0:T(1,128)}', space=vmem, size = 0x12000, scoped, tag = 'internal scratch']
  %s0 = inlined_call_operand.hbm [shape: f32[1,3], index: 0, kind: input, shape index: {}]
  %s1 = inlined_call_operand.hbm [shape: f32[4,8], index: 1, kind: input, shape index: {}]
  %s2 = inlined_call_operand.hbm [shape: f32[1,8], index: 2, kind: output, shape index: {}]
  %s3 = sld [smem:[#allocation0]]
  $region26: #{model_forward.1} parent=0
    _
  %s5 = ssub.s32 1, %s3
  %s6 = scalar_select 0, %s5, %s3
  $region1: #{model_forward.1} parent=0
    #allocation2 [shape = 'u8[512]{0}', space=smem, size = 0x200, scoped, tag = 'input window, operand 0, single buffered']
    #allocation3 [shape = 's32[1]{0}', space=sflag, size = 0x4, scoped, tag = 'scoped memory for model_forward.1']
    #allocation4 [shape = 's32[1]{0}', space=sflag, size = 0x4, scoped, tag = 'scoped memory for model_forward.1']
    #allocation5 [shape = 's32[1]{0}', space=sflag, size = 0x4, scoped, tag = 'scoped memory for model_forward.1']
    #allocation6 [shape = 'u8[2048]{0}', space=vmem, size = 0x800, scoped, tag = 'input window, operand 1, single buffered']
    #allocation7 [shape = 'u8[512]{0}', space=vmem, size = 0x400, scoped, tag = 'output window, operand 0, single buffered']
    %7 = vsyncpa [#allocation5], 0
    %8 = vsyncpa [#allocation3], 0
    %9 = vsyncpa [#allocation4], 0
    // Predicated region
    $region2: #{model_forward.1} parent=1 // pred_check
      _
    $region3: #{model_forward.1} parent=1 // pred_check_branch
      %11 = sbr.rel (0) target = $region5
    $region4: #{model_forward.1} parent=1 // pred_region
      %s13 = ssub.s32 16, 16
      %14 = vsyncadd [#allocation5], %s13
      %17 = dma.hbm_to_smem %s0, 16, [#allocation2], [#allocation5]
    $region5: #{model_forward.1} parent=1 // pred_fallthru
      _
    // Predicated region
    $region6: #{model_forward.1} parent=1 // pred_check
      _
    $region7: #{model_forward.1} parent=1 // pred_check_branch
      %19 = sbr.rel (0) target = $region9
    $region8: #{model_forward.1} parent=1 // pred_region
      %s21 = ssub.s32 64, 64
      %22 = vsyncadd [#allocation3], %s21
      %s24 = sshll.u32 [#allocation6], 4
      %s25 = int_to_ptr.vmem [resolvable:$true] %s24
      %27 = dma.hbm_to_vmem [thread:$0]  %s1, 64, %s25, [#allocation3]
    $region9: #{model_forward.1} parent=1 // pred_fallthru
      _
    // Predicated region
    $region10: #{model_forward.1} parent=1 // pred_check
      _
    $region11: #{model_forward.1} parent=1 // pred_check_branch
      %29 = sbr.rel (0) target = $region13
    $region12: #{model_forward.1} parent=1 // pred_region
      %30 = dma.done [#allocation5], 16
    $region13: #{model_forward.1} parent=1 // pred_fallthru
      _
    // Predicated region
    $region14: #{model_forward.1} parent=1 // pred_check
      _
    $region15: #{model_forward.1} parent=1 // pred_check_branch
      %32 = sbr.rel (0) target = $region17
    $region16: #{model_forward.1} parent=1 // pred_region
      %33 = dma.done [#allocation3], 64
    $region17: #{model_forward.1} parent=1 // pred_fallthru
      _
    %34 = sfence
    %v35 = vld [vmem:[#allocation6] sm:$0xf]
    %s36 = sld [smem:[#allocation2]]
    %s37 = sld [smem:[#allocation2 + $0x1]]
    %s38 = sld [smem:[#allocation2 + $0x2]]
    %v39 = vstv %s36
    %v40 = vmul.f32 %v39, %v35
    %v41 = vstv %s37
    %v42 = vmul.f32 %v41, %v35
    %v44 = vrot.slane %v42, 1
    %v46 = vadd.f32 %v40, %v44
    %v47 = vstv %s38
    %v48 = vmul.f32 %v47, %v35
    %v50 = vrot.slane %v48, 2
    %v52 = vadd.f32 %v46, %v50
    %v54 = vrot.slane %v35, 3
    %v56 = vadd.f32 %v52, %v54
    %v57 = vtanh.pop %v56
    %v58 = vmul.f32 %v57, %v57
    %v59 = vmul.f32 %v58, 0.16666667
    %vm60 = vcmask 57344
    %61 = vst.msk [vmem:[#allocation7] sm:$0x1] %vm60, %v59
    // Predicated region
    $region18: #{model_forward.1} parent=1 // pred_check
      _
    $region19: #{model_forward.1} parent=1 // pred_check_branch
      %63 = sbr.rel (0) target = $region21
    $region20: #{model_forward.1} parent=1 // pred_region
      %s65 = ssub.s32 16, 16
      %66 = vsyncadd [#allocation4], %s65
      %s68 = sshll.u32 [#allocation7], 4
      %s69 = int_to_ptr.vmem [resolvable:$true] %s68
      %71 = dma.vmem_to_hbm [thread:$0]  %s69, 16, %s2, [#allocation4]
    $region21: #{model_forward.1} parent=1 // pred_fallthru
      _
    // Predicated region
    $region22: #{model_forward.1} parent=1 // pred_check
      _
    $region23: #{model_forward.1} parent=1 // pred_check_branch
      %73 = sbr.rel (0) target = $region25
    $region24: #{model_forward.1} parent=1 // pred_region
      %74 = dma.done [#allocation4], 16
    $region25: #{model_forward.1} parent=1 // pred_fallthru
      _
    %75 = vsyncpa [#allocation3], 1
    %76 = vsyncpa [#allocation4], 1
    %77 = vsyncpa [#allocation5], 1

</llo_original>
